<compile_context>
chip_gen: v7x
topology: tpu7x:2x2x1
jax: 0.10.0
libtpu: 0.0.40
codegen_flags: <defaults>
</compile_context>

<pallas_src>
import jax
import jax.numpy as jnp
from jax.experimental import pallas as pl
from jax.experimental.pallas import tpu as pltpu

LANE = 128
SUBLANE = 8


def _round_up(n, m):
    return ((n + m - 1) // m) * m


def _pad2d(a, rows, cols):
    r, c = a.shape
    if r == rows and c == cols:
        return a
    return jnp.pad(a, ((0, rows - r), (0, cols - c)))


def _pad_feature(n):
    # Matmul N-dims: 128-lane minimum; 256-aligned when larger so the full
    # 2x256x256 MXU on v6e/v7x is used (extra zero columns are harmless on v5e).
    if n <= LANE:
        return LANE
    return _round_up(n, 2 * LANE)


def _vmem_capacity_bytes():
    try:
        return int(pltpu.get_tpu_info().vmem_capacity_bytes)
    except Exception:
        return 64 << 20  # conservative fallback (v7x per-core VMEM)


def _pick_h_tile(h_p, target):
    # Largest multiple of 128 that divides h_p and is <= target.
    m = h_p // LANE
    best = 1
    for d in range(1, m + 1):
        if m % d == 0 and d * LANE <= max(target, LANE):
            best = d
    return best * LANE


# ----------------------------- kernels ------------------------------------- #

def _fnn_resident_kernel(x_ref, w1_ref, b1_ref, w2_ref, b2_ref, o_ref):
    # x arrives fp32 from HBM; cast to bf16 on the VPU (free under MXU slack)
    # instead of a wrapper-side astype that would round-trip x through HBM.
    x = x_ref[...].astype(jnp.bfloat16)
    h = jnp.dot(x, w1_ref[...], preferred_element_type=jnp.float32)
    h = h + b1_ref[...]
    # Dropout: identity in eval/inference mode.
    # TODO(synk): training-mode dropout (pltpu.prng_seed + prng_random_bits mask).
    h = jnp.maximum(h, 0.5 * h)  # LeakyReLU(negative_slope=0.5), slope in (0, 1)
    y = jnp.dot(h.astype(jnp.bfloat16), w2_ref[...],
                preferred_element_type=jnp.float32)
    o_ref[...] = (y + b2_ref[...]).astype(o_ref.dtype)


def _fnn_htiled_kernel(x_ref, w1_ref, b1_ref, w2_ref, b2_ref, o_ref, acc_ref):
    # Grid = (batch tiles, hidden tiles). LeakyReLU is elementwise over the
    # hidden axis, so each hidden tile can be pushed through both layers and
    # accumulated into the output (P3: zero at k==0, finalize at last k).
    k = pl.program_id(1)

    @pl.when(k == 0)
    def _():
        acc_ref[...] = jnp.zeros_like(acc_ref)

    x = x_ref[...].astype(jnp.bfloat16)
    h = jnp.dot(x, w1_ref[...], preferred_element_type=jnp.float32)
    h = h + b1_ref[...]
    h = jnp.maximum(h, 0.5 * h)  # LeakyReLU(0.5); dropout = identity (eval)
    acc_ref[...] += jnp.dot(h.astype(jnp.bfloat16), w2_ref[...],
                            preferred_element_type=jnp.float32)

    @pl.when(k == pl.num_programs(1) - 1)
    def _():
        o_ref[...] = (acc_ref[...] + b2_ref[...]).astype(o_ref.dtype)


# ----------------------------- wrappers ------------------------------------ #

def prepare_params(w1, b1, w2, b2):
    """Pad + bf16-cast the weights ONCE (hoisted out of the per-call path)."""
    w1 = jnp.asarray(w1, jnp.float32)
    w2 = jnp.asarray(w2, jnp.float32)
    b1 = jnp.asarray(b1, jnp.float32).reshape(1, -1)
    b2 = jnp.asarray(b2, jnp.float32).reshape(1, -1)
    D_in, H = w1.shape
    D_out = w2.shape[1]
    din_p = _round_up(D_in, LANE)
    h_p = _pad_feature(H)
    dout_p = _pad_feature(D_out)
    # Zero padding is numerically exact: padded x cols hit zero w1 rows; padded
    # hidden cols have zero bias (LeakyReLU(0)=0) and zero w2 rows; padded output
    # cols are sliced away by the forward wrapper.
    return {
        "w1": _pad2d(w1, din_p, h_p).astype(jnp.bfloat16),
        "b1": _pad2d(b1, 1, h_p),
        "w2": _pad2d(w2, h_p, dout_p).astype(jnp.bfloat16),
        "b2": _pad2d(b2, 1, dout_p),
        "dims": (D_in, H, D_out),
        "pdims": (din_p, h_p, dout_p),
    }


def fnn_decoder_forward(x, params, *, block_b=512, block_h=512,
                        force_h_tiling=False):
    """y = LeakyReLU_0.5(x @ w1 + b1) @ w2 + b2   (Dropout = identity, eval mode)."""
    D_in, H, D_out = params["dims"]
    din_p, h_p, dout_p = params["pdims"]
    w1_p, b1_p, w2_p, b2_p = params["w1"], params["b1"], params["w2"], params["b2"]

    x = jnp.asarray(x, jnp.float32)
    B = x.shape[0]
    assert x.shape[1] == D_in

    # Batch tile: balance across grid steps (minimal padding waste), 16-row aligned.
    nb_target = max(1, -(-B // max(block_b, 16)))
    tb = _round_up(-(-B // nb_target), 16)
    b_p = _round_up(B, tb)
    # v7x has 2 TensorCores sharing the "parallel" grid axis: if the whole batch
    # fits in one tile, split it (only when it costs no extra padding).
    if b_p == tb and tb >= 32:
        tb_half = _round_up(tb // 2, 16)
        if _round_up(B, tb_half) <= b_p:
            tb = tb_half
            b_p = _round_up(B, tb)
    nb = b_p // tb

    # x stays fp32 (cast to bf16 inside the kernel); skip padding entirely when
    # already aligned so there is zero wrapper-side HBM traffic on x.
    x_p = x if (b_p == B and din_p == D_in) else _pad2d(x, b_p, din_p)

    vmem_budget = int(0.75 * _vmem_capacity_bytes())
    resident_weight_bytes = (din_p * h_p + h_p * dout_p) * 2 + (h_p + dout_p) * 4
    use_h_tiling = force_h_tiling or (resident_weight_bytes > int(0.6 * vmem_budget))

    if not use_h_tiling:
        tile_bytes = (2 * tb * din_p * 4          # x tile (f32), double-buffered
                      + 2 * tb * dout_p * 4       # out tile (f32), double-buffered
                      + resident_weight_bytes     # single-buffered weights/biases
                      + tb * h_p * (4 + 2)        # h (f32) + bf16 copy
                      + tb * din_p * 2)           # bf16 copy of x tile
        vmem_limit = int(min(max(32 << 20, 2 * tile_bytes), vmem_budget))
        cost = pl.CostEstimate(
            flops=2 * b_p * (din_p * h_p + h_p * dout_p),
            transcendentals=0,
            bytes_accessed=(x_p.size * 4 + w1_p.size * 2 + w2_p.size * 2
                            + (h_p + dout_p) * 4 + b_p * dout_p * 4))
        out = pl.pallas_call(
            _fnn_resident_kernel,
            out_shape=jax.ShapeDtypeStruct((b_p, dout_p), jnp.float32),
            grid=(nb,),
            in_specs=[
                pl.BlockSpec((tb, din_p), lambda i: (i, 0)),   # x: tiled over batch
                # Constant-index (resident) operands: single-buffered; default
                # double buffering would just double their VMEM footprint.
                pl.BlockSpec((din_p, h_p), lambda i: (0, 0),
                             pipeline_mode=pl.Buffered(1)),
                pl.BlockSpec((1, h_p), lambda i: (0, 0),
                             pipeline_mode=pl.Buffered(1)),
                pl.BlockSpec((h_p, dout_p), lambda i: (0, 0),
                             pipeline_mode=pl.Buffered(1)),
                pl.BlockSpec((1, dout_p), lambda i: (0, 0),
                             pipeline_mode=pl.Buffered(1)),
            ],
            out_specs=pl.BlockSpec((tb, dout_p), lambda i: (i, 0)),
            compiler_params=pltpu.CompilerParams(
                dimension_semantics=("parallel",),
                vmem_limit_bytes=vmem_limit),
            cost_estimate=cost,
        )(x_p, w1_p, b1_p, w2_p, b2_p)
    else:
        th = _pick_h_tile(h_p, _round_up(block_h, LANE))
        nk = h_p // th
        tile_bytes = (2 * tb * din_p * 4          # x tile (f32), double-buffered
                      + 2 * din_p * th * 2        # w1 k-tile (bf16), double-buffered
                      + 2 * th * dout_p * 2       # w2 k-tile (bf16), double-buffered
                      + 2 * th * 4 + dout_p * 4   # biases
                      + 2 * tb * dout_p * 4       # output block + acc scratch (f32)
                      + tb * th * (4 + 2)         # h tile f32 + bf16 copy
                      + tb * din_p * 2)           # bf16 copy of x tile
        vmem_limit = int(min(max(32 << 20, 2 * tile_bytes), vmem_budget))
        cost = pl.CostEstimate(
            flops=2 * b_p * (din_p * h_p + h_p * dout_p),
            transcendentals=0,
            bytes_accessed=(x_p.size * 4 + nb * (w1_p.size + w2_p.size) * 2
                            + (h_p + dout_p) * 4 + b_p * dout_p * 4))
        out = pl.pallas_call(
            _fnn_htiled_kernel,
            out_shape=jax.ShapeDtypeStruct((b_p, dout_p), jnp.float32),
            grid=(nb, nk),
            in_specs=[
                pl.BlockSpec((tb, din_p), lambda i, k: (i, 0)),
                pl.BlockSpec((din_p, th), lambda i, k: (0, k)),
                pl.BlockSpec((1, th), lambda i, k: (0, k)),
                pl.BlockSpec((th, dout_p), lambda i, k: (k, 0)),
                pl.BlockSpec((1, dout_p), lambda i, k: (0, 0),
                             pipeline_mode=pl.Buffered(1)),
            ],
            out_specs=pl.BlockSpec((tb, dout_p), lambda i, k: (i, 0)),
            scratch_shapes=[pltpu.VMEM((tb, dout_p), jnp.float32)],
            compiler_params=pltpu.CompilerParams(
                dimension_semantics=("parallel", "arbitrary"),
                vmem_limit_bytes=vmem_limit),
            cost_estimate=cost,
        )(x_p, w1_p, b1_p, w2_p, b2_p)

    # Output kept fp32 for parity with the fp32 PyTorch reference; switch
    # out_shape/o_ref to bf16 if downstream tolerates it (halves writeback).
    if b_p == B and dout_p == D_out:
        return out
    return out[:B, :D_out]


# ----------------------------- reference / init ----------------------------- #

def init_params(key, input_dim, hidden_dim, output_dim):
    # Deterministic init mimicking nn.Linear's uniform(-1/sqrt(fan_in), 1/sqrt(fan_in)).
    k1, k2, k3, k4 = jax.random.split(key, 4)
    bound1 = 1.0 / jnp.sqrt(jnp.float32(input_dim))
    bound2 = 1.0 / jnp.sqrt(jnp.float32(hidden_dim))
    w1 = jax.random.uniform(k1, (input_dim, hidden_dim), jnp.float32, -bound1, bound1)
    b1 = jax.random.uniform(k2, (1, hidden_dim), jnp.float32, -bound1, bound1)
    w2 = jax.random.uniform(k3, (hidden_dim, output_dim), jnp.float32, -bound2, bound2)
    b2 = jax.random.uniform(k4, (1, output_dim), jnp.float32, -bound2, bound2)
    return w1, b1, w2, b2


def reference_forward(x, w1, b1, w2, b2):
    h = x @ w1 + b1
    h = jnp.where(h >= 0.0, h, 0.5 * h)
    return h @ w2 + b2


if __name__ == "__main__":
    key = jax.random.PRNGKey(0)

    # --- Test 1: resident-weight path (small decoder) ---
    input_dim, hidden_dim, output_dim, batch = 32, 64, 16, 8
    kx, kp = jax.random.split(key)
    x = jax.random.normal(kx, (batch, input_dim), jnp.float32)
    w1, b1, w2, b2 = init_params(kp, input_dim, hidden_dim, output_dim)
    params = prepare_params(w1, b1, w2, b2)

    y = jax.block_until_ready(fnn_decoder_forward(x, params))
    y_ref = reference_forward(x, w1, b1, w2, b2)
    assert y.shape == (batch, output_dim)
    # bf16 matmul operands with fp32 accumulation -> loosened tolerance vs fp32.
    assert jnp.allclose(y, y_ref, atol=5e-2, rtol=5e-2), float(
        jnp.max(jnp.abs(y - y_ref)))

    # --- Test 2: H-tiled accumulator path (forced; 2 hidden tiles, 2 batch tiles) ---
    input_dim2, hidden_dim2, output_dim2, batch2 = 32, 256, 16, 24
    kx2, kp2 = jax.random.split(kp)
    x2 = jax.random.normal(kx2, (batch2, input_dim2), jnp.float32)
    w1b, b1b, w2b, b2b = init_params(kp2, input_dim2, hidden_dim2, output_dim2)
    params2 = prepare_params(w1b, b1b, w2b, b2b)

    y2 = jax.block_until_ready(
        fnn_decoder_forward(x2, params2, force_h_tiling=True, block_h=128))
    y2_ref = reference_forward(x2, w1b, b1b, w2b, b2b)
    assert y2.shape == (batch2, output_dim2)
    assert jnp.allclose(y2, y2_ref, atol=5e-2, rtol=5e-2), float(
        jnp.max(jnp.abs(y2 - y2_ref)))

    print("KERNEL_OK")
</pallas_src>

<mosaic_0001>
module attributes {stable_mosaic.version = 11 : i64} {
  func.func @_fnn_resident_kernel(%arg0: i32, %arg1: memref<16x128xf32, #tpu.memory_space<vmem>>, %arg2: memref<128x128xbf16, #tpu.memory_space<vmem>>, %arg3: memref<1x128xf32, #tpu.memory_space<vmem>>, %arg4: memref<128x128xbf16, #tpu.memory_space<vmem>>, %arg5: memref<1x128xf32, #tpu.memory_space<vmem>>, %arg6: memref<16x128xf32, #tpu.memory_space<vmem>>) attributes {dimension_semantics = [#tpu.dimension_semantics<parallel>], iteration_bounds = array<i64: 1>, scalar_prefetch = 0 : i64, scratch_operands = 0 : i64, tpu.core_type = #tpu.core_type<tc>, window_params = [{transform_indices = @transform_0, window_bounds = array<i64: 16, 128>}, {pipeline_mode = #tpu.pipeline_mode<synchronous>, transform_indices = @transform_1, window_bounds = array<i64: 128, 128>}, {pipeline_mode = #tpu.pipeline_mode<synchronous>, transform_indices = @transform_2, window_bounds = array<i64: 1, 128>}, {pipeline_mode = #tpu.pipeline_mode<synchronous>, transform_indices = @transform_3, window_bounds = array<i64: 128, 128>}, {pipeline_mode = #tpu.pipeline_mode<synchronous>, transform_indices = @transform_4, window_bounds = array<i64: 1, 128>}, {transform_indices = @transform_5, window_bounds = array<i64: 16, 128>}]} {
    %c0 = arith.constant 0 : index
    %c0_0 = arith.constant 0 : index
    %0 = vector.load %arg1[%c0, %c0_0] : memref<16x128xf32, #tpu.memory_space<vmem>>, vector<16x128xf32>
    %1 = arith.truncf %0 : vector<16x128xf32> to vector<16x128xbf16>
    %c0_1 = arith.constant 0 : index
    %c0_2 = arith.constant 0 : index
    %2 = vector.load %arg2[%c0_1, %c0_2] : memref<128x128xbf16, #tpu.memory_space<vmem>>, vector<128x128xbf16>
    %cst = arith.constant dense<0.000000e+00> : vector<16x128xf32>
    %3 = tpu.matmul %1, %2, %cst {dimension_numbers = #tpu.dot_dimension_numbers<[1], [0], [0], [1], [0, 0, 1, 1], [], []>} : vector<16x128xbf16>, vector<128x128xbf16>, vector<16x128xf32> -> vector<16x128xf32>
    %c0_3 = arith.constant 0 : index
    %c0_4 = arith.constant 0 : index
    %4 = vector.load %arg3[%c0_3, %c0_4] : memref<1x128xf32, #tpu.memory_space<vmem>>, vector<1x128xf32>
    %5 = vector.broadcast %4 : vector<1x128xf32> to vector<16x128xf32>
    %6 = arith.addf %3, %5 : vector<16x128xf32>
    %cst_5 = arith.constant 5.000000e-01 : f32
    %7 = vector.broadcast %cst_5 : f32 to vector<16x128xf32>
    %8 = arith.mulf %7, %6 : vector<16x128xf32>
    %9 = arith.maximumf %6, %8 : vector<16x128xf32>
    %10 = arith.truncf %9 : vector<16x128xf32> to vector<16x128xbf16>
    %c0_6 = arith.constant 0 : index
    %c0_7 = arith.constant 0 : index
    %11 = vector.load %arg4[%c0_6, %c0_7] : memref<128x128xbf16, #tpu.memory_space<vmem>>, vector<128x128xbf16>
    %cst_8 = arith.constant dense<0.000000e+00> : vector<16x128xf32>
    %12 = tpu.matmul %10, %11, %cst_8 {dimension_numbers = #tpu.dot_dimension_numbers<[1], [0], [0], [1], [0, 0, 1, 1], [], []>} : vector<16x128xbf16>, vector<128x128xbf16>, vector<16x128xf32> -> vector<16x128xf32>
    %c0_9 = arith.constant 0 : index
    %c0_10 = arith.constant 0 : index
    %13 = vector.load %arg5[%c0_9, %c0_10] : memref<1x128xf32, #tpu.memory_space<vmem>>, vector<1x128xf32>
    %14 = vector.broadcast %13 : vector<1x128xf32> to vector<16x128xf32>
    %15 = arith.addf %12, %14 : vector<16x128xf32>
    %c0_11 = arith.constant 0 : index
    %c0_12 = arith.constant 0 : index
    %16 = vector.load %arg6[%c0_11, %c0_12] : memref<16x128xf32, #tpu.memory_space<vmem>>, vector<16x128xf32>
    tpu.vector_store %arg6[%c0_11, %c0_12], %15 {strides = array<i32>} : memref<16x128xf32, #tpu.memory_space<vmem>>, vector<16x128xf32>,
    return
  }
  func.func @transform_0(%arg0: i32) -> (i32, i32) {
    %c0_i32 = arith.constant 0 : i32
    %c0_i32_0 = arith.constant 0 : i32
    return %arg0, %c0_i32 : i32, i32
  }
  func.func @transform_1(%arg0: i32) -> (i32, i32) {
    %c0_i32 = arith.constant 0 : i32
    %c0_i32_0 = arith.constant 0 : i32
    %c0_i32_1 = arith.constant 0 : i32
    return %c0_i32, %c0_i32_0 : i32, i32
  }
  func.func @transform_2(%arg0: i32) -> (i32, i32) {
    %c0_i32 = arith.constant 0 : i32
    %c0_i32_0 = arith.constant 0 : i32
    %c0_i32_1 = arith.constant 0 : i32
    return %c0_i32, %c0_i32_0 : i32, i32
  }
  func.func @transform_3(%arg0: i32) -> (i32, i32) {
    %c0_i32 = arith.constant 0 : i32
    %c0_i32_0 = arith.constant 0 : i32
    %c0_i32_1 = arith.constant 0 : i32
    return %c0_i32, %c0_i32_0 : i32, i32
  }
  func.func @transform_4(%arg0: i32) -> (i32, i32) {
    %c0_i32 = arith.constant 0 : i32
    %c0_i32_0 = arith.constant 0 : i32
    %c0_i32_1 = arith.constant 0 : i32
    return %c0_i32, %c0_i32_0 : i32, i32
  }
  func.func @transform_5(%arg0: i32) -> (i32, i32) {
    %c0_i32 = arith.constant 0 : i32
    %c0_i32_0 = arith.constant 0 : i32
    return %arg0, %c0_i32 : i32, i32
  }
}

</mosaic_0001>

<llo_original>
// kernel: tpu_custom_call.1
$region0: #{tpu_custom_call.1}
  #allocation0 [shape = 'u32[]', space=smem, size = 0x4, offset = 0x4, fixed_abs, tag = 'smem constant byte address 0x4 - core index']
  #allocation1 [shape = 'u32[144,128]{1,0:T(1,128)}', space=vmem, size = 0x12000, scoped, tag = 'internal scratch']
  %s0 = inlined_call_operand.hbm [shape: f32[16,128], index: 0, kind: input, shape index: {}]
  %s1 = inlined_call_operand.hbm [shape: bf16[128,128], index: 1, kind: input, shape index: {}]
  %s2 = inlined_call_operand.vmem [shape: f32[1,128], index: 2, kind: input, shape index: {}]
  %s3 = inlined_call_operand.hbm [shape: bf16[128,128], index: 3, kind: input, shape index: {}]
  %s4 = inlined_call_operand.vmem [shape: f32[1,128], index: 4, kind: input, shape index: {}]
  %s5 = inlined_call_operand.hbm [shape: f32[16,128], index: 5, kind: output, shape index: {}]
  %s6 = sld [smem:[#allocation0]]
  $region42: #{tpu_custom_call.1} parent=0
    _
  %s8 = ssub.s32 1, %s6
  %s9 = scalar_select 0, %s8, %s6
  $region1: #{tpu_custom_call.1} parent=0
    #allocation2 [shape = 'u8[8192]{0}', space=vmem, size = 0x2000, scoped, tag = 'input window, operand 0, single buffered']
    #allocation3 [shape = 's32[1]{0}', space=sflag, size = 0x4, scoped, tag = 'scoped memory for tpu_custom_call.1']
    #allocation4 [shape = 's32[1]{0}', space=sflag, size = 0x4, scoped, tag = 'scoped memory for tpu_custom_call.1']
    #allocation5 [shape = 'u8[32768]{0}', space=vmem, size = 0x8000, scoped, tag = 'input window, operand 1, single buffered']
    #allocation6 [shape = 's32[1]{0}', space=sflag, size = 0x4, scoped, tag = 'scoped memory for tpu_custom_call.1']
    #allocation7 [shape = 'u8[32768]{0}', space=vmem, size = 0x8000, scoped, tag = 'input window, operand 3, single buffered']
    #allocation8 [shape = 'u8[8192]{0}', space=vmem, size = 0x2000, scoped, tag = 'output window, operand 0, single buffered']
    %10 = vsyncpa [#allocation3], 0
    %11 = vsyncpa [#allocation6], 0
    %12 = vsyncpa [#allocation4], 0
    // Predicated region
    $region2: #{tpu_custom_call.1} parent=1 // pred_check
      _
    $region3: #{tpu_custom_call.1} parent=1 // pred_check_branch
      %14 = sbr.rel (0) target = $region5
    $region4: #{tpu_custom_call.1} parent=1 // pred_region
      %s16 = ssub.s32 256, 256
      %17 = vsyncadd [#allocation3], %s16
      %s18 = sshll.u32 [#allocation2], 4
      %s19 = int_to_ptr.vmem [resolvable:$true] %s18
      %24 = dma.hbm_to_vmem [thread:$0]  %s0, 256, %s19, [#allocation3], 128, 128, 8
    $region5: #{tpu_custom_call.1} parent=1 // pred_fallthru
      _
    // Predicated region
    $region6: #{tpu_custom_call.1} parent=1 // pred_check
      _
    $region7: #{tpu_custom_call.1} parent=1 // pred_check_branch
      %26 = sbr.rel (0) target = $region9
    $region8: #{tpu_custom_call.1} parent=1 // pred_region
      %s28 = ssub.s32 1024, 1024
      %29 = vsyncadd [#allocation6], %s28
      %s30 = sshll.u32 [#allocation5], 4
      %s31 = int_to_ptr.vmem [resolvable:$true] %s30
      %36 = dma.hbm_to_vmem [thread:$0]  %s1, 1024, %s31, [#allocation6], 64, 64, 4
    $region9: #{tpu_custom_call.1} parent=1 // pred_fallthru
      _
    // Predicated region
    $region10: #{tpu_custom_call.1} parent=1 // pred_check
      _
    $region11: #{tpu_custom_call.1} parent=1 // pred_check_branch
      %38 = sbr.rel (0) target = $region13
    $region12: #{tpu_custom_call.1} parent=1 // pred_region
      _
    $region13: #{tpu_custom_call.1} parent=1 // pred_fallthru
      _
    // Predicated region
    $region14: #{tpu_custom_call.1} parent=1 // pred_check
      _
    $region15: #{tpu_custom_call.1} parent=1 // pred_check_branch
      %40 = sbr.rel (0) target = $region17
    $region16: #{tpu_custom_call.1} parent=1 // pred_region
      %s42 = ssub.s32 1024, 1024
      %43 = vsyncadd [#allocation6], %s42
      %s44 = sshll.u32 [#allocation7], 4
      %s45 = int_to_ptr.vmem [resolvable:$true] %s44
      %50 = dma.hbm_to_vmem [thread:$0]  %s3, 1024, %s45, [#allocation6], 64, 64, 4
    $region17: #{tpu_custom_call.1} parent=1 // pred_fallthru
      _
    // Predicated region
    $region18: #{tpu_custom_call.1} parent=1 // pred_check
      _
    $region19: #{tpu_custom_call.1} parent=1 // pred_check_branch
      %52 = sbr.rel (0) target = $region21
    $region20: #{tpu_custom_call.1} parent=1 // pred_region
      _
    $region21: #{tpu_custom_call.1} parent=1 // pred_fallthru
      _
    // Predicated region
    $region22: #{tpu_custom_call.1} parent=1 // pred_check
      _
    $region23: #{tpu_custom_call.1} parent=1 // pred_check_branch
      %54 = sbr.rel (0) target = $region25
    $region24: #{tpu_custom_call.1} parent=1 // pred_region
      %55 = dma.done [#allocation3], 256
    $region25: #{tpu_custom_call.1} parent=1 // pred_fallthru
      _
    // Predicated region
    $region26: #{tpu_custom_call.1} parent=1 // pred_check
      _
    $region27: #{tpu_custom_call.1} parent=1 // pred_check_branch
      %57 = sbr.rel (0) target = $region29
    $region28: #{tpu_custom_call.1} parent=1 // pred_region
      %58 = dma.done [#allocation6], 1024
    $region29: #{tpu_custom_call.1} parent=1 // pred_fallthru
      _
    // Predicated region
    $region30: #{tpu_custom_call.1} parent=1 // pred_check
      _
    $region31: #{tpu_custom_call.1} parent=1 // pred_check_branch
      %60 = sbr.rel (0) target = $region33
    $region32: #{tpu_custom_call.1} parent=1 // pred_region
      %61 = dma.done [#allocation6], 1024
    $region33: #{tpu_custom_call.1} parent=1 // pred_fallthru
      _
    %v63 = vld [vmem:[#allocation2] sm:$0xff]
    %v64 = vld [vmem:[#allocation2 + $0x8] sm:$0xff]
    %v65 = vpack.c.bf16 %v64, %v63
    %v66 = vld [vmem:[#allocation5] sm:$0xf]
    %v67 = vld [vmem:[#allocation5 + $0x4] sm:$0xf]
    %v68 = vld [vmem:[#allocation5 + $0x8] sm:$0xf]
    %v69 = vld [vmem:[#allocation5 + $0xc] sm:$0xf]
    %v70 = vld [vmem:[#allocation5 + $0x10] sm:$0xf]
    %v71 = vld [vmem:[#allocation5 + $0x14] sm:$0xf]
    %v72 = vld [vmem:[#allocation5 + $0x18] sm:$0xf]
    %v73 = vld [vmem:[#allocation5 + $0x1c] sm:$0xf]
    %v74 = vld [vmem:[#allocation5 + $0x20] sm:$0xf]
    %v75 = vld [vmem:[#allocation5 + $0x24] sm:$0xf]
    %v76 = vld [vmem:[#allocation5 + $0x28] sm:$0xf]
    %v77 = vld [vmem:[#allocation5 + $0x2c] sm:$0xf]
    %v78 = vld [vmem:[#allocation5 + $0x30] sm:$0xf]
    %v79 = vld [vmem:[#allocation5 + $0x34] sm:$0xf]
    %v80 = vld [vmem:[#allocation5 + $0x38] sm:$0xf]
    %v81 = vld [vmem:[#allocation5 + $0x3c] sm:$0xf]
    %v82 = vld [vmem:[%s2] sm:$0x1]
    %v84 = vlaneseq
    %v85 = vshrl.u32 %v84, 7
    %v86 = vsub.s32 0, %v85
    %v87 = vrot.slane %v82, %v86
    %v105 = vunpack.c.l.b16 %v66
    %v106 = vunpack.c.l.b16 %v67
    %v107 = vunpack.c.l.b16 %v68
    %v108 = vunpack.c.l.b16 %v69
    %v109 = vunpack.c.l.b16 %v70
    %v110 = vunpack.c.l.b16 %v71
    %v111 = vunpack.c.l.b16 %v72
    %v112 = vunpack.c.l.b16 %v73
    %v113 = vunpack.c.l.b16 %v74
    %v114 = vunpack.c.l.b16 %v75
    %v115 = vunpack.c.l.b16 %v76
    %v116 = vunpack.c.l.b16 %v77
    %v117 = vunpack.c.l.b16 %v78
    %v118 = vunpack.c.l.b16 %v79
    %v119 = vunpack.c.l.b16 %v80
    %v120 = vunpack.c.l.b16 %v81
    %v121 = vpack.c.b16 %v106, %v105
    %v122 = vpack.c.b16 %v108, %v107
    %v123 = vpack.c.b16 %v110, %v109
    %v124 = vpack.c.b16 %v112, %v111
    %v125 = vpack.c.b16 %v114, %v113
    %v126 = vpack.c.b16 %v116, %v115
    %v127 = vpack.c.b16 %v118, %v117
    %v128 = vpack.c.b16 %v120, %v119
    %137 = vmatprep.subr.bf16.mxu0 0
    %138 = vmatpush1.bf16.msra.mxu0 %v121
    %139 = vmatprep.subr.bf16.mxu0 0
    %140 = vmatpush1.bf16.msra.mxu0 %v122
    %141 = vmatprep.subr.bf16.mxu0 0
    %142 = vmatpush1.bf16.msra.mxu0 %v123
    %143 = vmatprep.subr.bf16.mxu0 0
    %144 = vmatpush1.bf16.msra.mxu0 %v124
    %145 = vmatprep.subr.bf16.mxu0 0
    %146 = vmatpush1.bf16.msra.mxu0 %v125
    %147 = vmatprep.subr.bf16.mxu0 0
    %148 = vmatpush1.bf16.msra.mxu0 %v126
    %149 = vmatprep.subr.bf16.mxu0 0
    %150 = vmatpush1.bf16.msra.mxu0 %v127
    %151 = vmatprep.subr.bf16.mxu0 0
    %152 = vmatpush1.bf16.msra.mxu0 %v128
    %153 = vmatprep.subr.bf16.mxu0 0
    %154 = vmatpush1.bf16.msra.mxu0 0
    %155 = vmatprep.subr.bf16.mxu0 0
    %156 = vmatpush1.bf16.msra.mxu0 0
    %157 = vmatprep.subr.bf16.mxu0 0
    %158 = vmatpush1.bf16.msra.mxu0 0
    %159 = vmatprep.subr.bf16.mxu0 0
    %160 = vmatpush1.bf16.msra.mxu0 0
    %161 = vmatprep.subr.bf16.mxu0 0
    %162 = vmatpush1.bf16.msra.mxu0 0
    %163 = vmatprep.subr.bf16.mxu0 0
    %164 = vmatpush1.bf16.msra.mxu0 0
    %165 = vmatprep.subr.bf16.mxu0 0
    %166 = vmatpush1.bf16.msra.mxu0 0
    %167 = vmatprep.subr.bf16.mxu0 0
    %168 = vmatpush1.bf16.msra.mxu0 0
    %169 = vmatprep.mubr.bf16.mxu0 0
    %170 = vmatmul.mubr.bf16.gmra.mrb[0].mxu0 %v65
    %v171 = vpop.f32.mrb[0].mxu0
    %v172 = vadd.f32 %v87, %v171
    %v173 = vpop.f32.mrb[0].mxu0
    %v174 = vpop.f32.mrb[0].mxu0
    %v175 = vadd.f32 %v87, %v174
    %v176 = vpop.f32.mrb[0].mxu0
    %177 = vdwg.mxu0
    %v178 = vmul.f32 %v172, 0.5
    %v179 = vmul.f32 %v175, 0.5
    %v180 = vmax.f32 %v172, %v178
    %v181 = vmax.f32 %v175, %v179
    %v182 = vpack.c.bf16 %v181, %v180
    %v183 = vld [vmem:[#allocation7] sm:$0xf]
    %v184 = vld [vmem:[#allocation7 + $0x4] sm:$0xf]
    %v185 = vld [vmem:[#allocation7 + $0x8] sm:$0xf]
    %v186 = vld [vmem:[#allocation7 + $0xc] sm:$0xf]
    %v187 = vld [vmem:[#allocation7 + $0x10] sm:$0xf]
    %v188 = vld [vmem:[#allocation7 + $0x14] sm:$0xf]
    %v189 = vld [vmem:[#allocation7 + $0x18] sm:$0xf]
    %v190 = vld [vmem:[#allocation7 + $0x1c] sm:$0xf]
    %v191 = vld [vmem:[#allocation7 + $0x20] sm:$0xf]
    %v192 = vld [vmem:[#allocation7 + $0x24] sm:$0xf]
    %v193 = vld [vmem:[#allocation7 + $0x28] sm:$0xf]
    %v194 = vld [vmem:[#allocation7 + $0x2c] sm:$0xf]
    %v195 = vld [vmem:[#allocation7 + $0x30] sm:$0xf]
    %v196 = vld [vmem:[#allocation7 + $0x34] sm:$0xf]
    %v197 = vld [vmem:[#allocation7 + $0x38] sm:$0xf]
    %v198 = vld [vmem:[#allocation7 + $0x3c] sm:$0xf]
    %v199 = vld [vmem:[%s4] sm:$0x1]
    %v201 = vlaneseq
    %v202 = vshrl.u32 %v201, 7
    %v203 = vsub.s32 0, %v202
    %v204 = vrot.slane %v199, %v203
    %v222 = vunpack.c.l.b16 %v183
    %v223 = vunpack.c.l.b16 %v184
    %v224 = vunpack.c.l.b16 %v185
    %v225 = vunpack.c.l.b16 %v186
    %v226 = vunpack.c.l.b16 %v187
    %v227 = vunpack.c.l.b16 %v188
    %v228 = vunpack.c.l.b16 %v189
    %v229 = vunpack.c.l.b16 %v190
    %v230 = vunpack.c.l.b16 %v191
    %v231 = vunpack.c.l.b16 %v192
    %v232 = vunpack.c.l.b16 %v193
    %v233 = vunpack.c.l.b16 %v194
    %v234 = vunpack.c.l.b16 %v195
    %v235 = vunpack.c.l.b16 %v196
    %v236 = vunpack.c.l.b16 %v197
    %v237 = vunpack.c.l.b16 %v198
    %v238 = vpack.c.b16 %v223, %v222
    %v239 = vpack.c.b16 %v225, %v224
    %v240 = vpack.c.b16 %v227, %v226
    %v241 = vpack.c.b16 %v229, %v228
    %v242 = vpack.c.b16 %v231, %v230
    %v243 = vpack.c.b16 %v233, %v232
    %v244 = vpack.c.b16 %v235, %v234
    %v245 = vpack.c.b16 %v237, %v236
    %254 = vmatprep.subr.bf16.mxu0 0
    %255 = vmatpush1.bf16.msra.mxu0 %v238
    %256 = vmatprep.subr.bf16.mxu0 0
    %257 = vmatpush1.bf16.msra.mxu0 %v239
    %258 = vmatprep.subr.bf16.mxu0 0
    %259 = vmatpush1.bf16.msra.mxu0 %v240
    %260 = vmatprep.subr.bf16.mxu0 0
    %261 = vmatpush1.bf16.msra.mxu0 %v241
    %262 = vmatprep.subr.bf16.mxu0 0
    %263 = vmatpush1.bf16.msra.mxu0 %v242
    %264 = vmatprep.subr.bf16.mxu0 0
    %265 = vmatpush1.bf16.msra.mxu0 %v243
    %266 = vmatprep.subr.bf16.mxu0 0
    %267 = vmatpush1.bf16.msra.mxu0 %v244
    %268 = vmatprep.subr.bf16.mxu0 0
    %269 = vmatpush1.bf16.msra.mxu0 %v245
    %270 = vmatprep.subr.bf16.mxu0 0
    %271 = vmatpush1.bf16.msra.mxu0 0
    %272 = vmatprep.subr.bf16.mxu0 0
    %273 = vmatpush1.bf16.msra.mxu0 0
    %274 = vmatprep.subr.bf16.mxu0 0
    %275 = vmatpush1.bf16.msra.mxu0 0
    %276 = vmatprep.subr.bf16.mxu0 0
    %277 = vmatpush1.bf16.msra.mxu0 0
    %278 = vmatprep.subr.bf16.mxu0 0
    %279 = vmatpush1.bf16.msra.mxu0 0
    %280 = vmatprep.subr.bf16.mxu0 0
    %281 = vmatpush1.bf16.msra.mxu0 0
    %282 = vmatprep.subr.bf16.mxu0 0
    %283 = vmatpush1.bf16.msra.mxu0 0
    %284 = vmatprep.subr.bf16.mxu0 0
    %285 = vmatpush1.bf16.msra.mxu0 0
    %286 = vmatprep.mubr.bf16.mxu0 0
    %287 = vmatmul.mubr.bf16.gmra.mrb[0].mxu0 %v182
    %v288 = vpop.f32.mrb[0].mxu0
    %v289 = vadd.f32 %v204, %v288
    %v290 = vpop.f32.mrb[0].mxu0
    %v291 = vpop.f32.mrb[0].mxu0
    %v292 = vadd.f32 %v204, %v291
    %v293 = vpop.f32.mrb[0].mxu0
    %294 = vdwg.mxu0
    %295 = vst [vmem:[#allocation8] sm:$0xff] %v289
    %296 = vst [vmem:[#allocation8 + $0x8] sm:$0xff] %v292
    // Predicated region
    $region34: #{tpu_custom_call.1} parent=1 // pred_check
      _
    $region35: #{tpu_custom_call.1} parent=1 // pred_check_branch
      %298 = sbr.rel (0) target = $region37
    $region36: #{tpu_custom_call.1} parent=1 // pred_region
      %s300 = ssub.s32 256, 256
      %301 = vsyncadd [#allocation4], %s300
      %s302 = sshll.u32 [#allocation8], 4
      %s303 = int_to_ptr.vmem [resolvable:$true] %s302
      %308 = dma.vmem_to_hbm [thread:$0]  %s303, 256, %s5, [#allocation4], 128, 128, 8
    $region37: #{tpu_custom_call.1} parent=1 // pred_fallthru
      _
    // Predicated region
    $region38: #{tpu_custom_call.1} parent=1 // pred_check
      _
    $region39: #{tpu_custom_call.1} parent=1 // pred_check_branch
      %310 = sbr.rel (0) target = $region41
    $region40: #{tpu_custom_call.1} parent=1 // pred_region
      %311 = dma.done [#allocation4], 256
    $region41: #{tpu_custom_call.1} parent=1 // pred_fallthru
      _
    %312 = vsyncpa [#allocation3], 1
    %313 = vsyncpa [#allocation6], 1
    %314 = vsyncpa [#allocation4], 1

</llo_original>
